<compile_context>
chip_gen: v7x
topology: tpu7x:2x2x1
jax: 0.10.0
libtpu: 0.0.40
codegen_flags: <defaults>
</compile_context>

<pallas_src>
import functools

import jax
import jax.numpy as jnp
from jax import lax
from jax.experimental import pallas as pl
from jax.experimental.pallas import tpu as pltpu


# dot_general dims: contract dim 0 of both operands -> A^T @ B without a transpose.
_CONTRACT_ROWS = (((0,), (0,)), ((), ()))


def _round_up(x, m):
    return (x + m - 1) // m * m


def _vmem_capacity_bytes():
    try:
        return int(pltpu.get_tpu_info().vmem_capacity_bytes)
    except Exception:
        return 64 * 1024 * 1024  # conservative fallback (v7x per-TC)


def _cka_kernel(n_ref, sh_ref, th_ref, out_ref,
                cross_acc, s_acc, t_acc, ssum_acc, tsum_acc,
                *, eps, cast_bf16):
    i = pl.program_id(0)
    tile = sh_ref.shape[0]

    @pl.when(i == 0)
    def _init():
        cross_acc[...] = jnp.zeros_like(cross_acc)
        s_acc[...] = jnp.zeros_like(s_acc)
        t_acc[...] = jnp.zeros_like(t_acc)
        ssum_acc[...] = jnp.zeros_like(ssum_acc)
        tsum_acc[...] = jnp.zeros_like(tsum_acc)

    n_rows = n_ref[0]
    sh = sh_ref[...]          # (TILE_N, dS)
    th = th_ref[...]          # (TILE_N, dT)

    # In-kernel masking of the (possibly partial) last tile: rows past N are
    # undefined block contents; zero them so they don't contribute to the
    # uncentered Grams / column sums.  A no-op select on full tiles.
    row_ids = lax.broadcasted_iota(jnp.int32, (tile, 1), 0) + i * tile
    valid = row_ids < n_rows
    sh = jnp.where(valid, sh, jnp.zeros_like(sh))
    th = jnp.where(valid, th, jnp.zeros_like(th))

    if cast_bf16:
        sh = sh.astype(jnp.bfloat16)
        th = th.astype(jnp.bfloat16)

    cross_acc[...] += lax.dot_general(
        sh, th, _CONTRACT_ROWS, preferred_element_type=jnp.float32)
    s_acc[...] += lax.dot_general(
        sh, sh, _CONTRACT_ROWS, preferred_element_type=jnp.float32)
    t_acc[...] += lax.dot_general(
        th, th, _CONTRACT_ROWS, preferred_element_type=jnp.float32)
    ssum_acc[...] += jnp.sum(sh.astype(jnp.float32), axis=0, keepdims=True)
    tsum_acc[...] += jnp.sum(th.astype(jnp.float32), axis=0, keepdims=True)

    @pl.when(i == pl.num_programs(0) - 1)
    def _finalize():
        n_f = n_rows.astype(jnp.float32)
        inv_n = 1.0 / n_f
        ssum = ssum_acc[...]                              # (1, dS)
        tsum = tsum_acc[...]                              # (1, dT)
        # Centered Grams via algebraic correction; scale by 1/N before squaring
        # to keep the sum-of-squares in f32 range (scale undone below).
        cross = (cross_acc[...]
                 - inv_n * lax.dot_general(ssum, tsum, _CONTRACT_ROWS,
                                           preferred_element_type=jnp.float32)) * inv_n
        s_g = (s_acc[...]
               - inv_n * lax.dot_general(ssum, ssum, _CONTRACT_ROWS,
                                         preferred_element_type=jnp.float32)) * inv_n
        t_g = (t_acc[...]
               - inv_n * lax.dot_general(tsum, tsum, _CONTRACT_ROWS,
                                         preferred_element_type=jnp.float32)) * inv_n
        num = n_f * jnp.sqrt(jnp.sum(cross * cross))
        den1 = n_f * jnp.sqrt(jnp.sum(s_g * s_g)) + eps
        den2 = n_f * jnp.sqrt(jnp.sum(t_g * t_g)) + eps
        loss = 1.0 - num / jnp.sqrt(den1 * den2)
        out_ref[0] = loss.astype(out_ref.dtype)


def cka_loss(SH, TH, eps=1e-8, tile_n=None, cast_to_bf16=False):
    """Pallas CKA loss. SH: (..., dS), TH: (..., dT); leading dims flattened.

    tile_n: optional upper bound on the row tile (None = auto-grow to VMEM).
    cast_to_bf16: opt-in bf16 cast of the MXU operands (accumulation stays f32).
    """
    dS = SH.shape[-1]
    dT = TH.shape[-1]
    sh2d = SH.reshape(-1, dS)
    th2d = TH.reshape(-1, dT)
    n = sh2d.shape[0]
    if th2d.shape[0] != n:
        raise ValueError("SH and TH must flatten to the same number of rows")
    if n == 0:
        raise ValueError("CKA loss needs at least one row")

    bytes_s = jnp.dtype(sh2d.dtype).itemsize
    bytes_t = jnp.dtype(th2d.dtype).itemsize
    # Sublane multiple for the row tile: 8 (f32), 16 (bf16), 32 (int8).
    sub = max(8, 32 // min(bytes_s, bytes_t))

    # Generation-aware VMEM budget (v5e/v6e: 128 MiB, v7x: 64 MiB per TC).
    capacity = _vmem_capacity_bytes()
    budget = int(0.45 * capacity)

    # f32 accumulators: 3 Grams + 2 column-sum rows (rows pad to 8 sublanes).
    acc_bytes = 4 * (dS * dT + dS * dS + dT * dT + 8 * dS + 8 * dT)
    if acc_bytes > budget:
        # TODO(synk): feature-tiled Gram accumulation for very large hidden dims.
        raise ValueError(
            f"CKA Gram accumulators need {acc_bytes / 2**20:.1f} MiB of VMEM but the "
            f"budget is {budget / 2**20:.1f} MiB (VMEM capacity {capacity / 2**20:.0f} MiB); "
            "hidden dims too large for this kernel.")

    # Double-buffered input bytes per row (the single x2 is the pipeline depth).
    per_row_bytes = 2 * (dS * bytes_s + dT * bytes_t)
    max_tile = max(sub, (budget - acc_bytes) // per_row_bytes // sub * sub)
    tile = min(max_tile, _round_up(n, sub), 8192)
    if tile_n is not None:
        tile = min(tile, max(sub, _round_up(int(tile_n), sub)))
    tile = max(tile, sub)

    grid = (pl.cdiv(n, tile),)

    # Peak VMEM estimate: double-buffered inputs + accumulators (+ per-step dot
    # temporaries of accumulator size) + masked tile copies + slack.
    inputs_db = tile * per_row_bytes
    peak_est = inputs_db + 2 * acc_bytes + tile * (dS * bytes_s + dT * bytes_t) + (8 << 20)
    vmem_limit = int(min(max(peak_est, 32 * 1024 * 1024), 0.85 * capacity))

    kernel = functools.partial(_cka_kernel, eps=float(eps),
                               cast_bf16=bool(cast_to_bf16))

    n_arr = jnp.asarray([n], dtype=jnp.int32)   # runtime scalar (no recompile on N)

    grid_spec = pltpu.PrefetchScalarGridSpec(
        num_scalar_prefetch=1,
        grid=grid,
        in_specs=[
            pl.BlockSpec((tile, dS), lambda i, n_ref: (i, 0)),
            pl.BlockSpec((tile, dT), lambda i, n_ref: (i, 0)),
        ],
        out_specs=pl.BlockSpec(memory_space=pltpu.SMEM),
        scratch_shapes=[
            pltpu.VMEM((dS, dT), jnp.float32),   # cross Gram accumulator
            pltpu.VMEM((dS, dS), jnp.float32),   # student self-Gram
            pltpu.VMEM((dT, dT), jnp.float32),   # teacher self-Gram
            pltpu.VMEM((1, dS), jnp.float32),    # student column sums
            pltpu.VMEM((1, dT), jnp.float32),    # teacher column sums
        ],
    )

    out = pl.pallas_call(
        kernel,
        out_shape=jax.ShapeDtypeStruct((1,), jnp.float32),
        grid_spec=grid_spec,
        compiler_params=pltpu.CompilerParams(
            dimension_semantics=("arbitrary",),   # N axis is a reduction
            vmem_limit_bytes=vmem_limit,
        ),
    )(n_arr, sh2d, th2d)
    return out[0]


def _cka_ref(SH, TH, eps=1e-8):
    """Pure-JAX reference (float32) for sanity checking."""
    dS, dT = SH.shape[-1], TH.shape[-1]
    sh = SH.reshape(-1, dS).astype(jnp.float32)
    th = TH.reshape(-1, dT).astype(jnp.float32)
    sh = sh - sh.mean(0, keepdims=True)
    th = th - th.mean(0, keepdims=True)
    num = jnp.linalg.norm(sh.T @ th)
    den1 = jnp.linalg.norm(sh.T @ sh) + eps
    den2 = jnp.linalg.norm(th.T @ th) + eps
    return 1.0 - num / jnp.sqrt(den1 * den2)


if __name__ == "__main__":
    # Small shapes implied by a BERT-KD setting: (batch, seq, hidden).
    batch, seq, hidden_s, hidden_t = 2, 8, 32, 32
    key = jax.random.PRNGKey(0)
    k1, k2 = jax.random.split(key)
    SH = jax.random.normal(k1, (batch, seq, hidden_s), dtype=jnp.float32)
    TH = jax.random.normal(k2, (batch, seq, hidden_t), dtype=jnp.float32)

    # 1) Single-tile, auto tile-size path.
    ref = _cka_ref(SH, TH, eps=1e-8)
    loss = jax.block_until_ready(cka_loss(SH, TH, eps=1e-8))
    assert jnp.isfinite(loss), "non-finite loss"
    assert abs(float(loss) - float(ref)) < 1e-4, (float(loss), float(ref))

    # 2) Multi-tile path with a ragged last tile (exercises streaming
    #    accumulation, finalize-on-last, and in-kernel row masking: N=14, tile=8).
    SH_r, TH_r = SH[:, :7, :], TH[:, :7, :]
    ref_r = _cka_ref(SH_r, TH_r, eps=1e-8)
    loss_r = jax.block_until_ready(cka_loss(SH_r, TH_r, eps=1e-8, tile_n=8))
    assert jnp.isfinite(loss_r), "non-finite ragged loss"
    assert abs(float(loss_r) - float(ref_r)) < 1e-4, (float(loss_r), float(ref_r))

    # 3) Opt-in bf16 MXU path (looser tolerance; accumulation stays f32).
    loss_bf = jax.block_until_ready(cka_loss(SH, TH, eps=1e-8, cast_to_bf16=True))
    assert jnp.isfinite(loss_bf), "non-finite bf16 loss"
    assert abs(float(loss_bf) - float(ref)) < 5e-2, (float(loss_bf), float(ref))

    print("KERNEL_OK")
</pallas_src>

<mosaic_0001>
module attributes {stable_mosaic.version = 11 : i64} {
  func.func @_cka_kernel(%arg0: i32, %arg1: memref<1xi32, #tpu.memory_space<smem>>, %arg2: memref<16x32xf32, #tpu.memory_space<vmem>>, %arg3: memref<16x32xf32, #tpu.memory_space<vmem>>, %arg4: memref<1xf32, #tpu.memory_space<smem>>, %arg5: memref<32x32xf32, #tpu.memory_space<vmem>>, %arg6: memref<32x32xf32, #tpu.memory_space<vmem>>, %arg7: memref<32x32xf32, #tpu.memory_space<vmem>>, %arg8: memref<1x32xf32, #tpu.memory_space<vmem>>, %arg9: memref<1x32xf32, #tpu.memory_space<vmem>>) attributes {dimension_semantics = [#tpu.dimension_semantics<arbitrary>], iteration_bounds = array<i64: 1>, scalar_prefetch = 1 : i64, scratch_operands = 5 : i64, tpu.core_type = #tpu.core_type<tc>, window_params = [{transform_indices = @transform_0, window_bounds = array<i64: 16, 32>}, {transform_indices = @transform_1, window_bounds = array<i64: 16, 32>}, {transform_indices = @transform_2, window_bounds = array<i64: 1>}]} {
    %c0_i32 = arith.constant 0 : i32
    %0 = arith.cmpi eq, %arg0, %c0_i32 : i32
    %1 = arith.extui %0 : i1 to i32
    %c0_i32_0 = arith.constant 0 : i32
    %2 = arith.cmpi ne, %1, %c0_i32_0 : i32
    scf.if %2 {
      %cst_33 = arith.constant 0.000000e+00 : f32
      %45 = vector.broadcast %cst_33 : f32 to vector<32x32xf32>
      %c0_34 = arith.constant 0 : index
      %c0_35 = arith.constant 0 : index
      %46 = vector.load %arg5[%c0_34, %c0_35] : memref<32x32xf32, #tpu.memory_space<vmem>>, vector<32x32xf32>
      tpu.vector_store %arg5[%c0_34, %c0_35], %45 {strides = array<i32>} : memref<32x32xf32, #tpu.memory_space<vmem>>, vector<32x32xf32>,
      %cst_36 = arith.constant 0.000000e+00 : f32
      %47 = vector.broadcast %cst_36 : f32 to vector<32x32xf32>
      %c0_37 = arith.constant 0 : index
      %c0_38 = arith.constant 0 : index
      %48 = vector.load %arg6[%c0_37, %c0_38] : memref<32x32xf32, #tpu.memory_space<vmem>>, vector<32x32xf32>
      tpu.vector_store %arg6[%c0_37, %c0_38], %47 {strides = array<i32>} : memref<32x32xf32, #tpu.memory_space<vmem>>, vector<32x32xf32>,
      %cst_39 = arith.constant 0.000000e+00 : f32
      %49 = vector.broadcast %cst_39 : f32 to vector<32x32xf32>
      %c0_40 = arith.constant 0 : index
      %c0_41 = arith.constant 0 : index
      %50 = vector.load %arg7[%c0_40, %c0_41] : memref<32x32xf32, #tpu.memory_space<vmem>>, vector<32x32xf32>
      tpu.vector_store %arg7[%c0_40, %c0_41], %49 {strides = array<i32>} : memref<32x32xf32, #tpu.memory_space<vmem>>, vector<32x32xf32>,
      %cst_42 = arith.constant 0.000000e+00 : f32
      %51 = vector.broadcast %cst_42 : f32 to vector<1x32xf32>
      %c0_43 = arith.constant 0 : index
      %c0_44 = arith.constant 0 : index
      %52 = vector.load %arg8[%c0_43, %c0_44] : memref<1x32xf32, #tpu.memory_space<vmem>>, vector<1x32xf32>
      tpu.vector_store %arg8[%c0_43, %c0_44], %51 {strides = array<i32>} : memref<1x32xf32, #tpu.memory_space<vmem>>, vector<1x32xf32>,
      %cst_45 = arith.constant 0.000000e+00 : f32
      %53 = vector.broadcast %cst_45 : f32 to vector<1x32xf32>
      %c0_46 = arith.constant 0 : index
      %c0_47 = arith.constant 0 : index
      %54 = vector.load %arg9[%c0_46, %c0_47] : memref<1x32xf32, #tpu.memory_space<vmem>>, vector<1x32xf32>
      tpu.vector_store %arg9[%c0_46, %c0_47], %53 {strides = array<i32>} : memref<1x32xf32, #tpu.memory_space<vmem>>, vector<1x32xf32>,
    } else {
    }
    %c0 = arith.constant 0 : index
    %3 = memref.load %arg1[%c0] : memref<1xi32, #tpu.memory_space<smem>>
    %c0_1 = arith.constant 0 : index
    %c0_2 = arith.constant 0 : index
    %4 = vector.load %arg2[%c0_1, %c0_2] : memref<16x32xf32, #tpu.memory_space<vmem>>, vector<16x32xf32>
    %c0_3 = arith.constant 0 : index
    %c0_4 = arith.constant 0 : index
    %5 = vector.load %arg3[%c0_3, %c0_4] : memref<16x32xf32, #tpu.memory_space<vmem>>, vector<16x32xf32>
    %6 = tpu.iota {dimensions = array<i32: 0>} : vector<16x1xi32>
    %c16_i32 = arith.constant 16 : i32
    %7 = arith.muli %arg0, %c16_i32 : i32
    %8 = vector.broadcast %7 : i32 to vector<16x1xi32>
    %9 = arith.addi %6, %8 : vector<16x1xi32>
    %10 = vector.broadcast %3 : i32 to vector<16x1xi32>
    %11 = arith.cmpi slt, %9, %10 : vector<16x1xi32>
    %cst = arith.constant 0.000000e+00 : f32
    %12 = vector.broadcast %cst : f32 to vector<16x32xf32>
    %13 = vector.shape_cast %11 : vector<16x1xi1> to vector<16x1xi1>
    %14 = vector.broadcast %13 : vector<16x1xi1> to vector<16x32xi1>
    %15 = arith.select %14, %4, %12 : vector<16x32xi1>, vector<16x32xf32>
    %cst_5 = arith.constant 0.000000e+00 : f32
    %16 = vector.broadcast %cst_5 : f32 to vector<16x32xf32>
    %17 = vector.shape_cast %11 : vector<16x1xi1> to vector<16x1xi1>
    %18 = vector.broadcast %17 : vector<16x1xi1> to vector<16x32xi1>
    %19 = arith.select %18, %5, %16 : vector<16x32xi1>, vector<16x32xf32>
    %c0_6 = arith.constant 0 : index
    %c0_7 = arith.constant 0 : index
    %20 = vector.load %arg5[%c0_6, %c0_7] : memref<32x32xf32, #tpu.memory_space<vmem>>, vector<32x32xf32>
    %cst_8 = arith.constant dense<0.000000e+00> : vector<32x32xf32>
    %21 = tpu.matmul %15, %19, %cst_8 {dimension_numbers = #tpu.dot_dimension_numbers<[0], [0], [1], [1], [0, 1, 1, 1], [], []>} : vector<16x32xf32>, vector<16x32xf32>, vector<32x32xf32> -> vector<32x32xf32>
    %22 = arith.addf %20, %21 : vector<32x32xf32>
    %c0_9 = arith.constant 0 : index
    %c0_10 = arith.constant 0 : index
    %23 = vector.load %arg5[%c0_9, %c0_10] : memref<32x32xf32, #tpu.memory_space<vmem>>, vector<32x32xf32>
    tpu.vector_store %arg5[%c0_9, %c0_10], %22 {strides = array<i32>} : memref<32x32xf32, #tpu.memory_space<vmem>>, vector<32x32xf32>,
    %c0_11 = arith.constant 0 : index
    %c0_12 = arith.constant 0 : index
    %24 = vector.load %arg6[%c0_11, %c0_12] : memref<32x32xf32, #tpu.memory_space<vmem>>, vector<32x32xf32>
    %cst_13 = arith.constant dense<0.000000e+00> : vector<32x32xf32>
    %25 = tpu.matmul %15, %15, %cst_13 {dimension_numbers = #tpu.dot_dimension_numbers<[0], [0], [1], [1], [0, 1, 1, 1], [], []>} : vector<16x32xf32>, vector<16x32xf32>, vector<32x32xf32> -> vector<32x32xf32>
    %26 = arith.addf %24, %25 : vector<32x32xf32>
    %c0_14 = arith.constant 0 : index
    %c0_15 = arith.constant 0 : index
    %27 = vector.load %arg6[%c0_14, %c0_15] : memref<32x32xf32, #tpu.memory_space<vmem>>, vector<32x32xf32>
    tpu.vector_store %arg6[%c0_14, %c0_15], %26 {strides = array<i32>} : memref<32x32xf32, #tpu.memory_space<vmem>>, vector<32x32xf32>,
    %c0_16 = arith.constant 0 : index
    %c0_17 = arith.constant 0 : index
    %28 = vector.load %arg7[%c0_16, %c0_17] : memref<32x32xf32, #tpu.memory_space<vmem>>, vector<32x32xf32>
    %cst_18 = arith.constant dense<0.000000e+00> : vector<32x32xf32>
    %29 = tpu.matmul %19, %19, %cst_18 {dimension_numbers = #tpu.dot_dimension_numbers<[0], [0], [1], [1], [0, 1, 1, 1], [], []>} : vector<16x32xf32>, vector<16x32xf32>, vector<32x32xf32> -> vector<32x32xf32>
    %30 = arith.addf %28, %29 : vector<32x32xf32>
    %c0_19 = arith.constant 0 : index
    %c0_20 = arith.constant 0 : index
    %31 = vector.load %arg7[%c0_19, %c0_20] : memref<32x32xf32, #tpu.memory_space<vmem>>, vector<32x32xf32>
    tpu.vector_store %arg7[%c0_19, %c0_20], %30 {strides = array<i32>} : memref<32x32xf32, #tpu.memory_space<vmem>>, vector<32x32xf32>,
    %c0_21 = arith.constant 0 : index
    %c0_22 = arith.constant 0 : index
    %32 = vector.load %arg8[%c0_21, %c0_22] : memref<1x32xf32, #tpu.memory_space<vmem>>, vector<1x32xf32>
    %cst_23 = arith.constant dense<0.000000e+00> : vector<32xf32>
    %33 = vector.multi_reduction <add>, %15, %cst_23 [0] : vector<16x32xf32> to vector<32xf32>
    %34 = vector.shape_cast %33 : vector<32xf32> to vector<1x32xf32>
    %35 = arith.addf %32, %34 : vector<1x32xf32>
    %c0_24 = arith.constant 0 : index
    %c0_25 = arith.constant 0 : index
    %36 = vector.load %arg8[%c0_24, %c0_25] : memref<1x32xf32, #tpu.memory_space<vmem>>, vector<1x32xf32>
    tpu.vector_store %arg8[%c0_24, %c0_25], %35 {strides = array<i32>} : memref<1x32xf32, #tpu.memory_space<vmem>>, vector<1x32xf32>,
    %c0_26 = arith.constant 0 : index
    %c0_27 = arith.constant 0 : index
    %37 = vector.load %arg9[%c0_26, %c0_27] : memref<1x32xf32, #tpu.memory_space<vmem>>, vector<1x32xf32>
    %cst_28 = arith.constant dense<0.000000e+00> : vector<32xf32>
    %38 = vector.multi_reduction <add>, %19, %cst_28 [0] : vector<16x32xf32> to vector<32xf32>
    %39 = vector.shape_cast %38 : vector<32xf32> to vector<1x32xf32>
    %40 = arith.addf %37, %39 : vector<1x32xf32>
    %c0_29 = arith.constant 0 : index
    %c0_30 = arith.constant 0 : index
    %41 = vector.load %arg9[%c0_29, %c0_30] : memref<1x32xf32, #tpu.memory_space<vmem>>, vector<1x32xf32>
    tpu.vector_store %arg9[%c0_29, %c0_30], %40 {strides = array<i32>} : memref<1x32xf32, #tpu.memory_space<vmem>>, vector<1x32xf32>,
    %c0_i32_31 = arith.constant 0 : i32
    %42 = arith.cmpi eq, %arg0, %c0_i32_31 : i32
    %43 = arith.extui %42 : i1 to i32
    %c0_i32_32 = arith.constant 0 : i32
    %44 = arith.cmpi ne, %43, %c0_i32_32 : i32
    scf.if %44 {
      %45 = arith.sitofp %3 : i32 to f32
      %cst_33 = arith.constant 1.000000e+00 : f32
      %46 = arith.divf %cst_33, %45 : f32
      %c0_34 = arith.constant 0 : index
      %c0_35 = arith.constant 0 : index
      %47 = vector.load %arg8[%c0_34, %c0_35] : memref<1x32xf32, #tpu.memory_space<vmem>>, vector<1x32xf32>
      %c0_36 = arith.constant 0 : index
      %c0_37 = arith.constant 0 : index
      %48 = vector.load %arg9[%c0_36, %c0_37] : memref<1x32xf32, #tpu.memory_space<vmem>>, vector<1x32xf32>
      %c0_38 = arith.constant 0 : index
      %c0_39 = arith.constant 0 : index
      %49 = vector.load %arg5[%c0_38, %c0_39] : memref<32x32xf32, #tpu.memory_space<vmem>>, vector<32x32xf32>
      %cst_40 = arith.constant dense<0.000000e+00> : vector<32x32xf32>
      %50 = tpu.matmul %47, %48, %cst_40 {dimension_numbers = #tpu.dot_dimension_numbers<[0], [0], [1], [1], [0, 1, 1, 1], [], []>} : vector<1x32xf32>, vector<1x32xf32>, vector<32x32xf32> -> vector<32x32xf32>
      %51 = vector.broadcast %46 : f32 to vector<32x32xf32>
      %52 = arith.mulf %51, %50 : vector<32x32xf32>
      %53 = arith.subf %49, %52 : vector<32x32xf32>
      %54 = vector.broadcast %46 : f32 to vector<32x32xf32>
      %55 = arith.mulf %53, %54 : vector<32x32xf32>
      %c0_41 = arith.constant 0 : index
      %c0_42 = arith.constant 0 : index
      %56 = vector.load %arg6[%c0_41, %c0_42] : memref<32x32xf32, #tpu.memory_space<vmem>>, vector<32x32xf32>
      %cst_43 = arith.constant dense<0.000000e+00> : vector<32x32xf32>
      %57 = tpu.matmul %47, %47, %cst_43 {dimension_numbers = #tpu.dot_dimension_numbers<[0], [0], [1], [1], [0, 1, 1, 1], [], []>} : vector<1x32xf32>, vector<1x32xf32>, vector<32x32xf32> -> vector<32x32xf32>
      %58 = vector.broadcast %46 : f32 to vector<32x32xf32>
      %59 = arith.mulf %58, %57 : vector<32x32xf32>
      %60 = arith.subf %56, %59 : vector<32x32xf32>
      %61 = vector.broadcast %46 : f32 to vector<32x32xf32>
      %62 = arith.mulf %60, %61 : vector<32x32xf32>
      %c0_44 = arith.constant 0 : index
      %c0_45 = arith.constant 0 : index
      %63 = vector.load %arg7[%c0_44, %c0_45] : memref<32x32xf32, #tpu.memory_space<vmem>>, vector<32x32xf32>
      %cst_46 = arith.constant dense<0.000000e+00> : vector<32x32xf32>
      %64 = tpu.matmul %48, %48, %cst_46 {dimension_numbers = #tpu.dot_dimension_numbers<[0], [0], [1], [1], [0, 1, 1, 1], [], []>} : vector<1x32xf32>, vector<1x32xf32>, vector<32x32xf32> -> vector<32x32xf32>
      %65 = vector.broadcast %46 : f32 to vector<32x32xf32>
      %66 = arith.mulf %65, %64 : vector<32x32xf32>
      %67 = arith.subf %63, %66 : vector<32x32xf32>
      %68 = vector.broadcast %46 : f32 to vector<32x32xf32>
      %69 = arith.mulf %67, %68 : vector<32x32xf32>
      %70 = arith.mulf %55, %55 : vector<32x32xf32>
      %71 = vector.shape_cast %70 : vector<32x32xf32> to vector<1x32x32xf32>
      %cst_47 = arith.constant dense<0.000000e+00> : vector<1xf32>
      %72 = vector.multi_reduction <add>, %71, %cst_47 [1, 2] : vector<1x32x32xf32> to vector<1xf32>
      %73 = vector.shape_cast %72 : vector<1xf32> to vector<1x1x1xf32>
      %74 = vector.extract %73[0, 0, 0] : f32 from vector<1x1x1xf32>
      %75 = math.sqrt %74 : f32
      %76 = arith.mulf %45, %75 : f32
      %77 = arith.mulf %62, %62 : vector<32x32xf32>
      %78 = vector.shape_cast %77 : vector<32x32xf32> to vector<1x32x32xf32>
      %cst_48 = arith.constant dense<0.000000e+00> : vector<1xf32>
      %79 = vector.multi_reduction <add>, %78, %cst_48 [1, 2] : vector<1x32x32xf32> to vector<1xf32>
      %80 = vector.shape_cast %79 : vector<1xf32> to vector<1x1x1xf32>
      %81 = vector.extract %80[0, 0, 0] : f32 from vector<1x1x1xf32>
      %82 = math.sqrt %81 : f32
      %83 = arith.mulf %45, %82 : f32
      %cst_49 = arith.constant 9.99999993E-9 : f32
      %84 = arith.addf %83, %cst_49 : f32
      %85 = arith.mulf %69, %69 : vector<32x32xf32>
      %86 = vector.shape_cast %85 : vector<32x32xf32> to vector<1x32x32xf32>
      %cst_50 = arith.constant dense<0.000000e+00> : vector<1xf32>
      %87 = vector.multi_reduction <add>, %86, %cst_50 [1, 2] : vector<1x32x32xf32> to vector<1xf32>
      %88 = vector.shape_cast %87 : vector<1xf32> to vector<1x1x1xf32>
      %89 = vector.extract %88[0, 0, 0] : f32 from vector<1x1x1xf32>
      %90 = math.sqrt %89 : f32
      %91 = arith.mulf %45, %90 : f32
      %cst_51 = arith.constant 9.99999993E-9 : f32
      %92 = arith.addf %91, %cst_51 : f32
      %93 = arith.mulf %84, %92 : f32
      %94 = math.sqrt %93 : f32
      %95 = arith.divf %76, %94 : f32
      %cst_52 = arith.constant 1.000000e+00 : f32
      %96 = arith.subf %cst_52, %95 : f32
      %c0_53 = arith.constant 0 : index
      %97 = memref.load %arg4[%c0_53] : memref<1xf32, #tpu.memory_space<smem>>
      memref.store %96, %arg4[%c0_53] : memref<1xf32, #tpu.memory_space<smem>>
    } else {
    }
    return
  }
  func.func @transform_0(%arg0: i32, %arg1: memref<1xi32, #tpu.memory_space<smem>>) -> (i32, i32) {
    %c0_i32 = arith.constant 0 : i32
    %c0_i32_0 = arith.constant 0 : i32
    return %arg0, %c0_i32 : i32, i32
  }
  func.func @transform_1(%arg0: i32, %arg1: memref<1xi32, #tpu.memory_space<smem>>) -> (i32, i32) {
    %c0_i32 = arith.constant 0 : i32
    %c0_i32_0 = arith.constant 0 : i32
    return %arg0, %c0_i32 : i32, i32
  }
  func.func @transform_2(%arg0: i32, %arg1: memref<1xi32, #tpu.memory_space<smem>>) -> i32 {
    %c0_i32 = arith.constant 0 : i32
    %c0_i32_0 = arith.constant 0 : i32
    return %c0_i32 : i32
  }
}

</mosaic_0001>

<llo_original>
// kernel: tpu_custom_call.1
$region0: #{tpu_custom_call.1}
  #allocation0 [shape = 'u32[]', space=smem, size = 0x4, offset = 0x4, fixed_abs, tag = 'smem constant byte address 0x4 - core index']
  #allocation1 [shape = 'u32[144,128]{1,0:T(1,128)}', space=vmem, size = 0x12000, scoped, tag = 'internal scratch']
  #allocation2 [shape = 'f32[32,32]{1,0:T(8,128)}', space=vmem, size = 0x4000, scoped, tag = 'scratch operand']
  #allocation3 [shape = 'f32[32,32]{1,0:T(8,128)}', space=vmem, size = 0x4000, scoped, tag = 'scratch operand']
  #allocation4 [shape = 'f32[32,32]{1,0:T(8,128)}', space=vmem, size = 0x4000, scoped, tag = 'scratch operand']
  #allocation5 [shape = 'f32[1,32]{1,0:T(1,128)}', space=vmem, size = 0x200, scoped, tag = 'scratch operand']
  #allocation6 [shape = 'f32[1,32]{1,0:T(1,128)}', space=vmem, size = 0x200, scoped, tag = 'scratch operand']
  #allocation7 [shape = 's32[1]{0}', space=sflag, size = 0x4, scoped, tag = 'scoped memory for tpu_custom_call.1']
  #allocation8 [shape = 's32[1]{0:T(128)S(6)}', space=smem, size = 0x200, scoped, tag = 'prefetched SMEM operand 0']
  %s0 = inlined_call_operand.<no memory space> [shape: s32[1], index: 0, kind: input, shape index: {}]
  %s1 = inlined_call_operand.hbm [shape: f32[16,32], index: 1, kind: input, shape index: {}]
  %s2 = inlined_call_operand.hbm [shape: f32[16,32], index: 2, kind: input, shape index: {}]
  %s3 = inlined_call_operand.hbm [shape: f32[1], index: 3, kind: output, shape index: {}]
  %s4 = sld [smem:[#allocation0]]
  $region34: #{tpu_custom_call.1} parent=0
    _
  %s6 = ssub.s32 1, %s4
  %s7 = scalar_select 0, %s6, %s4
  %8 = sst [smem:[#allocation8]] %s0
  $region1: #{tpu_custom_call.1} parent=0
    #allocation9 [shape = 'u8[8192]{0}', space=vmem, size = 0x2000, scoped, tag = 'input window, operand 1, single buffered']
    #allocation10 [shape = 's32[1]{0}', space=sflag, size = 0x4, scoped, tag = 'scoped memory for tpu_custom_call.1']
    #allocation11 [shape = 's32[1]{0}', space=sflag, size = 0x4, scoped, tag = 'scoped memory for tpu_custom_call.1']
    #allocation12 [shape = 'u8[8192]{0}', space=vmem, size = 0x2000, scoped, tag = 'input window, operand 2, single buffered']
    #allocation13 [shape = 's32[1]{0}', space=sflag, size = 0x4, scoped, tag = 'scoped memory for tpu_custom_call.1']
    #allocation14 [shape = 'u8[512]{0}', space=smem, size = 0x200, scoped, tag = 'output window, operand 0, single buffered']
    %9 = vsyncpa [#allocation10], 0
    %10 = vsyncpa [#allocation13], 0
    %11 = vsyncpa [#allocation11], 0
    // Predicated region
    $region2: #{tpu_custom_call.1} parent=1 // pred_check
      _
    $region3: #{tpu_custom_call.1} parent=1 // pred_check_branch
      %13 = sbr.rel (0) target = $region5
    $region4: #{tpu_custom_call.1} parent=1 // pred_region
      %s15 = ssub.s32 256, 256
      %16 = vsyncadd [#allocation10], %s15
      %s17 = sshll.u32 [#allocation9], 4
      %s18 = int_to_ptr.vmem [resolvable:$true] %s17
      %23 = dma.hbm_to_vmem [thread:$0]  %s1, 256, %s18, [#allocation10], 128, 128, 8
    $region5: #{tpu_custom_call.1} parent=1 // pred_fallthru
      _
    // Predicated region
    $region6: #{tpu_custom_call.1} parent=1 // pred_check
      _
    $region7: #{tpu_custom_call.1} parent=1 // pred_check_branch
      %25 = sbr.rel (0) target = $region9
    $region8: #{tpu_custom_call.1} parent=1 // pred_region
      %s27 = ssub.s32 256, 256
      %28 = vsyncadd [#allocation13], %s27
      %s29 = sshll.u32 [#allocation12], 4
      %s30 = int_to_ptr.vmem [resolvable:$true] %s29
      %35 = dma.hbm_to_vmem [thread:$0]  %s2, 256, %s30, [#allocation13], 128, 128, 8
    $region9: #{tpu_custom_call.1} parent=1 // pred_fallthru
      _
    // Predicated region
    $region10: #{tpu_custom_call.1} parent=1 // pred_check
      _
    $region11: #{tpu_custom_call.1} parent=1 // pred_check_branch
      %37 = sbr.rel (0) target = $region13
    $region12: #{tpu_custom_call.1} parent=1 // pred_region
      %38 = dma.done [#allocation10], 256
    $region13: #{tpu_custom_call.1} parent=1 // pred_fallthru
      _
    // Predicated region
    $region14: #{tpu_custom_call.1} parent=1 // pred_check
      _
    $region15: #{tpu_custom_call.1} parent=1 // pred_check_branch
      %40 = sbr.rel (0) target = $region17
    $region16: #{tpu_custom_call.1} parent=1 // pred_region
      %41 = dma.done [#allocation13], 256
    $region17: #{tpu_custom_call.1} parent=1 // pred_fallthru
      _
    %p42 = scmp.eq.s32.totalorder 0, 0
    // Predicated region
    $region18: #{tpu_custom_call.1} parent=1 // pred_check
      %p43 = pneg %p42
    $region19: #{tpu_custom_call.1} parent=1 // pred_check_branch
      %45 = sbr.rel (%p43) target = $region21
    $region20: #{tpu_custom_call.1} parent=1 // pred_region
      %vm46 = vcmask 261120
      %47 = vst.msk [vmem:[#allocation2] sm:$0xff] %vm46, 0.0
      %48 = vst.msk [vmem:[#allocation2 + $0x8] sm:$0xff] %vm46, 0.0
      %49 = vst.msk [vmem:[#allocation2 + $0x10] sm:$0xff] %vm46, 0.0
      %50 = vst.msk [vmem:[#allocation2 + $0x18] sm:$0xff] %vm46, 0.0
      %51 = vst.msk [vmem:[#allocation3] sm:$0xff] %vm46, 0.0
      %52 = vst.msk [vmem:[#allocation3 + $0x8] sm:$0xff] %vm46, 0.0
      %53 = vst.msk [vmem:[#allocation3 + $0x10] sm:$0xff] %vm46, 0.0
      %54 = vst.msk [vmem:[#allocation3 + $0x18] sm:$0xff] %vm46, 0.0
      %55 = vst.msk [vmem:[#allocation4] sm:$0xff] %vm46, 0.0
      %56 = vst.msk [vmem:[#allocation4 + $0x8] sm:$0xff] %vm46, 0.0
      %57 = vst.msk [vmem:[#allocation4 + $0x10] sm:$0xff] %vm46, 0.0
      %58 = vst.msk [vmem:[#allocation4 + $0x18] sm:$0xff] %vm46, 0.0
      %vm59 = vcmask 253952
      %60 = vst.msk [vmem:[#allocation5] sm:$0x1] %vm59, 0.0
      %61 = vst.msk [vmem:[#allocation6] sm:$0x1] %vm59, 0.0
    $region21: #{tpu_custom_call.1} parent=1 // pred_fallthru
      _
    %s62 = sld [smem:[#allocation8]]
    %v63 = vld [vmem:[#allocation9] sm:$0xff]
    %v64 = vld [vmem:[#allocation9 + $0x8] sm:$0xff]
    %v65 = vld [vmem:[#allocation12] sm:$0xff]
    %v66 = vld [vmem:[#allocation12 + $0x8] sm:$0xff]
    %v67 = vlaneseq
    %v68 = vshrl.u32 %v67, 7
    %v69 = vadd.s32 %v68, 8
    %s70 = smul.u32 0, 16
    %v71 = vstv %s70
    %v72 = vadd.s32 %v68, %v71
    %v73 = vadd.s32 %v69, %v71
    %v74 = vstv %s62
    %vm75 = vcmp.lt.s32.totalorder %v72, %v74
    %vm76 = vcmp.lt.s32.totalorder %v73, %v74
    %v77 = vsel %vm75, 1, 0
    %v78 = vsel %vm76, 1, 0
    %vm79 = vcmp.eq.s32.totalorder %v77, 1
    %vm80 = vcmp.eq.s32.totalorder %v78, 1
    %v81 = vsel %vm79, %v63, 0.0
    %v82 = vsel %vm80, %v64, 0.0
    %v83 = vsel %vm79, %v65, 0.0
    %v84 = vsel %vm80, %v66, 0.0
    %v85 = vld [vmem:[#allocation2] sm:$0xff]
    %v86 = vld [vmem:[#allocation2 + $0x8] sm:$0xff]
    %v87 = vld [vmem:[#allocation2 + $0x10] sm:$0xff]
    %v88 = vld [vmem:[#allocation2 + $0x18] sm:$0xff]
    %89 = vxpose.xlu0.b32.start [1/16] %v81, 128
    %90 = vxpose.xlu0.b32.cont [2/16] %v82, 128
    %91 = vxpose.xlu0.b32.cont [3/16] 0.0, 128
    %92 = vxpose.xlu0.b32.cont [4/16] 0.0, 128
    %93 = vxpose.xlu0.b32.cont [5/16] 0.0, 128
    %94 = vxpose.xlu0.b32.cont [6/16] 0.0, 128
    %95 = vxpose.xlu0.b32.cont [7/16] 0.0, 128
    %96 = vxpose.xlu0.b32.cont [8/16] 0.0, 128
    %97 = vxpose.xlu0.b32.cont [9/16] 0.0, 128
    %98 = vxpose.xlu0.b32.cont [10/16] 0.0, 128
    %99 = vxpose.xlu0.b32.cont [11/16] 0.0, 128
    %100 = vxpose.xlu0.b32.cont [12/16] 0.0, 128
    %101 = vxpose.xlu0.b32.cont [13/16] 0.0, 128
    %102 = vxpose.xlu0.b32.cont [14/16] 0.0, 128
    %103 = vxpose.xlu0.b32.cont [15/16] 0.0, 128
    %104 = vxpose.xlu0.b32.end [16/16] 0.0, 128
    %v105 = vpop.trf.xlu0
    %v106 = vpop.trf.xlu0
    %v107 = vpop.trf.xlu0
    %v108 = vpop.trf.xlu0
    %v109 = vpop.trf.xlu0
    %v110 = vpop.trf.xlu0
    %v111 = vpop.trf.xlu0
    %v112 = vpop.trf.xlu0
    %v113 = vpop.trf.xlu0
    %v114 = vpop.trf.xlu0
    %v115 = vpop.trf.xlu0
    %v116 = vpop.trf.xlu0
    %v117 = vpop.trf.xlu0
    %v118 = vpop.trf.xlu0
    %v119 = vpop.trf.xlu0
    %v120 = vpop.trf.xlu0
    %vm121 = vcmask 130048
    %v123 = vsel %vm121, %v105, 0
    %v126 = vsel %vm121, %v106, 0
    %v129 = vsel %vm121, %v107, 0
    %v132 = vsel %vm121, %v108, 0
    %134 = vmatprep.subr.mxu0 0.0
    %135 = vmatpush1.msra.mxu0 %v83
    %136 = vmatprep.subr.mxu0 0.0
    %137 = vmatpush1.msra.mxu0 %v84
    %138 = vmatprep.subr.mxu0 0.0
    %139 = vmatpush1.msra.mxu0 0.0
    %140 = vmatprep.subr.mxu0 0.0
    %141 = vmatpush1.msra.mxu0 0.0
    %142 = vmatprep.subr.mxu0 0.0
    %143 = vmatpush1.msra.mxu0 0.0
    %144 = vmatprep.subr.mxu0 0.0
    %145 = vmatpush1.msra.mxu0 0.0
    %146 = vmatprep.subr.mxu0 0.0
    %147 = vmatpush1.msra.mxu0 0.0
    %148 = vmatprep.subr.mxu0 0.0
    %149 = vmatpush1.msra.mxu0 0.0
    %150 = vmatprep.subr.mxu0 0.0
    %151 = vmatpush1.msra.mxu0 0.0
    %152 = vmatprep.subr.mxu0 0.0
    %153 = vmatpush1.msra.mxu0 0.0
    %154 = vmatprep.subr.mxu0 0.0
    %155 = vmatpush1.msra.mxu0 0.0
    %156 = vmatprep.subr.mxu0 0.0
    %157 = vmatpush1.msra.mxu0 0.0
    %158 = vmatprep.subr.mxu0 0.0
    %159 = vmatpush1.msra.mxu0 0.0
    %160 = vmatprep.subr.mxu0 0.0
    %161 = vmatpush1.msra.mxu0 0.0
    %162 = vmatprep.subr.mxu0 0.0
    %163 = vmatpush1.msra.mxu0 0.0
    %164 = vmatprep.subr.mxu0 0.0
    %165 = vmatpush1.msra.mxu0 0.0
    %166 = vmatprep.subr.mxu0 0.0
    %167 = vmatpush1.msra.mxu0 0.0
    %168 = vmatprep.subr.mxu0 0.0
    %169 = vmatpush1.msra.mxu0 0.0
    %170 = vmatprep.subr.mxu0 0.0
    %171 = vmatpush1.msra.mxu0 0.0
    %172 = vmatprep.subr.mxu0 0.0
    %173 = vmatpush1.msra.mxu0 0.0
    %174 = vmatprep.subr.mxu0 0.0
    %175 = vmatpush1.msra.mxu0 0.0
    %176 = vmatprep.subr.mxu0 0.0
    %177 = vmatpush1.msra.mxu0 0.0
    %178 = vmatprep.subr.mxu0 0.0
    %179 = vmatpush1.msra.mxu0 0.0
    %180 = vmatprep.subr.mxu0 0.0
    %181 = vmatpush1.msra.mxu0 0.0
    %182 = vmatprep.subr.mxu0 0.0
    %183 = vmatpush1.msra.mxu0 0.0
    %184 = vmatprep.subr.mxu0 0.0
    %185 = vmatpush1.msra.mxu0 0.0
    %186 = vmatprep.subr.mxu0 0.0
    %187 = vmatpush1.msra.mxu0 0.0
    %188 = vmatprep.subr.mxu0 0.0
    %189 = vmatpush1.msra.mxu0 0.0
    %190 = vmatprep.subr.mxu0 0.0
    %191 = vmatpush1.msra.mxu0 0.0
    %192 = vmatprep.subr.mxu0 0.0
    %193 = vmatpush1.msra.mxu0 0.0
    %194 = vmatprep.subr.mxu0 0.0
    %195 = vmatpush1.msra.mxu0 0.0
    %196 = vmatprep.subr.mxu0 0.0
    %197 = vmatpush1.msra.mxu0 0.0
    %198 = vmatprep.mubr.f32.mxu0 0.0
    %199 = vmatmul.mubr.f32.gmra.mrb[0].mxu0 %v123
    %v200 = vpop.f32.mrb[0].mxu0
    %v201 = vadd.f32 0.0, %v200
    %v202 = vpop.f32.mrb[0].mxu0
    %203 = vmatprep.mubr.f32.mxu0 0.0
    %204 = vmatmul.mubr.f32.gmra.mrb[0].mxu0 %v126
    %v205 = vpop.f32.mrb[0].mxu0
    %v206 = vadd.f32 0.0, %v205
    %v207 = vpop.f32.mrb[0].mxu0
    %208 = vmatprep.mubr.f32.mxu0 0.0
    %209 = vmatmul.mubr.f32.gmra.mrb[0].mxu0 %v129
    %v210 = vpop.f32.mrb[0].mxu0
    %v211 = vadd.f32 0.0, %v210
    %v212 = vpop.f32.mrb[0].mxu0
    %213 = vmatprep.mubr.f32.mxu0 0.0
    %214 = vmatmul.mubr.f32.gmra.mrb[0].mxu0 %v132
    %v215 = vpop.f32.mrb[0].mxu0
    %v216 = vadd.f32 0.0, %v215
    %v217 = vpop.f32.mrb[0].mxu0
    %218 = vdwg.mxu0
    %v219 = vadd.f32 %v85, %v201
    %v220 = vadd.f32 %v86, %v206
    %v221 = vadd.f32 %v87, %v211
    %v222 = vadd.f32 %v88, %v216
    %vm223 = vcmask 261120
    %224 = vst.msk [vmem:[#allocation2] sm:$0xff] %vm223, %v219
    %225 = vst.msk [vmem:[#allocation2 + $0x8] sm:$0xff] %vm223, %v220
    %226 = vst.msk [vmem:[#allocation2 + $0x10] sm:$0xff] %vm223, %v221
    %227 = vst.msk [vmem:[#allocation2 + $0x18] sm:$0xff] %vm223, %v222
    %v228 = vld [vmem:[#allocation3] sm:$0xff]
    %v229 = vld [vmem:[#allocation3 + $0x8] sm:$0xff]
    %v230 = vld [vmem:[#allocation3 + $0x10] sm:$0xff]
    %v231 = vld [vmem:[#allocation3 + $0x18] sm:$0xff]
    %232 = vmatprep.subr.mxu0 0.0
    %233 = vmatpush1.msra.mxu0 %v81
    %234 = vmatprep.subr.mxu0 0.0
    %235 = vmatpush1.msra.mxu0 %v82
    %236 = vmatprep.subr.mxu0 0.0
    %237 = vmatpush1.msra.mxu0 0.0
    %238 = vmatprep.subr.mxu0 0.0
    %239 = vmatpush1.msra.mxu0 0.0
    %240 = vmatprep.subr.mxu0 0.0
    %241 = vmatpush1.msra.mxu0 0.0
    %242 = vmatprep.subr.mxu0 0.0
    %243 = vmatpush1.msra.mxu0 0.0
    %244 = vmatprep.subr.mxu0 0.0
    %245 = vmatpush1.msra.mxu0 0.0
    %246 = vmatprep.subr.mxu0 0.0
    %247 = vmatpush1.msra.mxu0 0.0
    %248 = vmatprep.subr.mxu0 0.0
    %249 = vmatpush1.msra.mxu0 0.0
    %250 = vmatprep.subr.mxu0 0.0
    %251 = vmatpush1.msra.mxu0 0.0
    %252 = vmatprep.subr.mxu0 0.0
    %253 = vmatpush1.msra.mxu0 0.0
    %254 = vmatprep.subr.mxu0 0.0
    %255 = vmatpush1.msra.mxu0 0.0
    %256 = vmatprep.subr.mxu0 0.0
    %257 = vmatpush1.msra.mxu0 0.0
    %258 = vmatprep.subr.mxu0 0.0
    %259 = vmatpush1.msra.mxu0 0.0
    %260 = vmatprep.subr.mxu0 0.0
    %261 = vmatpush1.msra.mxu0 0.0
    %262 = vmatprep.subr.mxu0 0.0
    %263 = vmatpush1.msra.mxu0 0.0
    %264 = vmatprep.subr.mxu0 0.0
    %265 = vmatpush1.msra.mxu0 0.0
    %266 = vmatprep.subr.mxu0 0.0
    %267 = vmatpush1.msra.mxu0 0.0
    %268 = vmatprep.subr.mxu0 0.0
    %269 = vmatpush1.msra.mxu0 0.0
    %270 = vmatprep.subr.mxu0 0.0
    %271 = vmatpush1.msra.mxu0 0.0
    %272 = vmatprep.subr.mxu0 0.0
    %273 = vmatpush1.msra.mxu0 0.0
    %274 = vmatprep.subr.mxu0 0.0
    %275 = vmatpush1.msra.mxu0 0.0
    %276 = vmatprep.subr.mxu0 0.0
    %277 = vmatpush1.msra.mxu0 0.0
    %278 = vmatprep.subr.mxu0 0.0
    %279 = vmatpush1.msra.mxu0 0.0
    %280 = vmatprep.subr.mxu0 0.0
    %281 = vmatpush1.msra.mxu0 0.0
    %282 = vmatprep.subr.mxu0 0.0
    %283 = vmatpush1.msra.mxu0 0.0
    %284 = vmatprep.subr.mxu0 0.0
    %285 = vmatpush1.msra.mxu0 0.0
    %286 = vmatprep.subr.mxu0 0.0
    %287 = vmatpush1.msra.mxu0 0.0
    %288 = vmatprep.subr.mxu0 0.0
    %289 = vmatpush1.msra.mxu0 0.0
    %290 = vmatprep.subr.mxu0 0.0
    %291 = vmatpush1.msra.mxu0 0.0
    %292 = vmatprep.subr.mxu0 0.0
    %293 = vmatpush1.msra.mxu0 0.0
    %294 = vmatprep.subr.mxu0 0.0
    %295 = vmatpush1.msra.mxu0 0.0
    %296 = vmatprep.mubr.f32.mxu0 0.0
    %297 = vmatmul.mubr.f32.gmra.mrb[0].mxu0 %v123
    %v298 = vpop.f32.mrb[0].mxu0
    %v299 = vadd.f32 0.0, %v298
    %v300 = vpop.f32.mrb[0].mxu0
    %301 = vmatprep.mubr.f32.mxu0 0.0
    %302 = vmatmul.mubr.f32.gmra.mrb[0].mxu0 %v126
    %v303 = vpop.f32.mrb[0].mxu0
    %v304 = vadd.f32 0.0, %v303
    %v305 = vpop.f32.mrb[0].mxu0
    %306 = vmatprep.mubr.f32.mxu0 0.0
    %307 = vmatmul.mubr.f32.gmra.mrb[0].mxu0 %v129
    %v308 = vpop.f32.mrb[0].mxu0
    %v309 = vadd.f32 0.0, %v308
    %v310 = vpop.f32.mrb[0].mxu0
    %311 = vmatprep.mubr.f32.mxu0 0.0
    %312 = vmatmul.mubr.f32.gmra.mrb[0].mxu0 %v132
    %v313 = vpop.f32.mrb[0].mxu0
    %v314 = vadd.f32 0.0, %v313
    %v315 = vpop.f32.mrb[0].mxu0
    %316 = vdwg.mxu0
    %v317 = vadd.f32 %v228, %v299
    %v318 = vadd.f32 %v229, %v304
    %v319 = vadd.f32 %v230, %v309
    %v320 = vadd.f32 %v231, %v314
    %321 = vst.msk [vmem:[#allocation3] sm:$0xff] %vm223, %v317
    %322 = vst.msk [vmem:[#allocation3 + $0x8] sm:$0xff] %vm223, %v318
    %323 = vst.msk [vmem:[#allocation3 + $0x10] sm:$0xff] %vm223, %v319
    %324 = vst.msk [vmem:[#allocation3 + $0x18] sm:$0xff] %vm223, %v320
    %v325 = vld [vmem:[#allocation4] sm:$0xff]
    %v326 = vld [vmem:[#allocation4 + $0x8] sm:$0xff]
    %v327 = vld [vmem:[#allocation4 + $0x10] sm:$0xff]
    %v328 = vld [vmem:[#allocation4 + $0x18] sm:$0xff]
    %329 = vxpose.xlu0.b32.start [1/16] %v83, 128
    %330 = vxpose.xlu0.b32.cont [2/16] %v84, 128
    %331 = vxpose.xlu0.b32.cont [3/16] 0.0, 128
    %332 = vxpose.xlu0.b32.cont [4/16] 0.0, 128
    %333 = vxpose.xlu0.b32.cont [5/16] 0.0, 128
    %334 = vxpose.xlu0.b32.cont [6/16] 0.0, 128
    %335 = vxpose.xlu0.b32.cont [7/16] 0.0, 128
    %336 = vxpose.xlu0.b32.cont [8/16] 0.0, 128
    %337 = vxpose.xlu0.b32.cont [9/16] 0.0, 128
    %338 = vxpose.xlu0.b32.cont [10/16] 0.0, 128
    %339 = vxpose.xlu0.b32.cont [11/16] 0.0, 128
    %340 = vxpose.xlu0.b32.cont [12/16] 0.0, 128
    %341 = vxpose.xlu0.b32.cont [13/16] 0.0, 128
    %342 = vxpose.xlu0.b32.cont [14/16] 0.0, 128
    %343 = vxpose.xlu0.b32.cont [15/16] 0.0, 128
    %344 = vxpose.xlu0.b32.end [16/16] 0.0, 128
    %v345 = vpop.trf.xlu0
    %v346 = vpop.trf.xlu0
    %v347 = vpop.trf.xlu0
    %v348 = vpop.trf.xlu0
    %v349 = vpop.trf.xlu0
    %v350 = vpop.trf.xlu0
    %v351 = vpop.trf.xlu0
    %v352 = vpop.trf.xlu0
    %v353 = vpop.trf.xlu0
    %v354 = vpop.trf.xlu0
    %v355 = vpop.trf.xlu0
    %v356 = vpop.trf.xlu0
    %v357 = vpop.trf.xlu0
    %v358 = vpop.trf.xlu0
    %v359 = vpop.trf.xlu0
    %v360 = vpop.trf.xlu0
    %v362 = vsel %vm121, %v345, 0
    %v365 = vsel %vm121, %v346, 0
    %v368 = vsel %vm121, %v347, 0
    %v371 = vsel %vm121, %v348, 0
    %373 = vmatprep.subr.mxu0 0.0
    %374 = vmatpush1.msra.mxu0 %v83
    %375 = vmatprep.subr.mxu0 0.0
    %376 = vmatpush1.msra.mxu0 %v84
    %377 = vmatprep.subr.mxu0 0.0
    %378 = vmatpush1.msra.mxu0 0.0
    %379 = vmatprep.subr.mxu0 0.0
    %380 = vmatpush1.msra.mxu0 0.0
    %381 = vmatprep.subr.mxu0 0.0
    %382 = vmatpush1.msra.mxu0 0.0
    %383 = vmatprep.subr.mxu0 0.0
    %384 = vmatpush1.msra.mxu0 0.0
    %385 = vmatprep.subr.mxu0 0.0
    %386 = vmatpush1.msra.mxu0 0.0
    %387 = vmatprep.subr.mxu0 0.0
    %388 = vmatpush1.msra.mxu0 0.0
    %389 = vmatprep.subr.mxu0 0.0
    %390 = vmatpush1.msra.mxu0 0.0
    %391 = vmatprep.subr.mxu0 0.0
    %392 = vmatpush1.msra.mxu0 0.0
    %393 = vmatprep.subr.mxu0 0.0
    %394 = vmatpush1.msra.mxu0 0.0
    %395 = vmatprep.subr.mxu0 0.0
    %396 = vmatpush1.msra.mxu0 0.0
    %397 = vmatprep.subr.mxu0 0.0
    %398 = vmatpush1.msra.mxu0 0.0
    %399 = vmatprep.subr.mxu0 0.0
    %400 = vmatpush1.msra.mxu0 0.0
    %401 = vmatprep.subr.mxu0 0.0
    %402 = vmatpush1.msra.mxu0 0.0
    %403 = vmatprep.subr.mxu0 0.0
    %404 = vmatpush1.msra.mxu0 0.0
    %405 = vmatprep.subr.mxu0 0.0
    %406 = vmatpush1.msra.mxu0 0.0
    %407 = vmatprep.subr.mxu0 0.0
    %408 = vmatpush1.msra.mxu0 0.0
    %409 = vmatprep.subr.mxu0 0.0
    %410 = vmatpush1.msra.mxu0 0.0
    %411 = vmatprep.subr.mxu0 0.0
    %412 = vmatpush1.msra.mxu0 0.0
    %413 = vmatprep.subr.mxu0 0.0
    %414 = vmatpush1.msra.mxu0 0.0
    %415 = vmatprep.subr.mxu0 0.0
    %416 = vmatpush1.msra.mxu0 0.0
    %417 = vmatprep.subr.mxu0 0.0
    %418 = vmatpush1.msra.mxu0 0.0
    %419 = vmatprep.subr.mxu0 0.0
    %420 = vmatpush1.msra.mxu0 0.0
    %421 = vmatprep.subr.mxu0 0.0
    %422 = vmatpush1.msra.mxu0 0.0
    %423 = vmatprep.subr.mxu0 0.0
    %424 = vmatpush1.msra.mxu0 0.0
    %425 = vmatprep.subr.mxu0 0.0
    %426 = vmatpush1.msra.mxu0 0.0
    %427 = vmatprep.subr.mxu0 0.0
    %428 = vmatpush1.msra.mxu0 0.0
    %429 = vmatprep.subr.mxu0 0.0
    %430 = vmatpush1.msra.mxu0 0.0
    %431 = vmatprep.subr.mxu0 0.0
    %432 = vmatpush1.msra.mxu0 0.0
    %433 = vmatprep.subr.mxu0 0.0
    %434 = vmatpush1.msra.mxu0 0.0
    %435 = vmatprep.subr.mxu0 0.0
    %436 = vmatpush1.msra.mxu0 0.0
    %437 = vmatprep.mubr.f32.mxu0 0.0
    %438 = vmatmul.mubr.f32.gmra.mrb[0].mxu0 %v362
    %v439 = vpop.f32.mrb[0].mxu0
    %v440 = vadd.f32 0.0, %v439
    %v441 = vpop.f32.mrb[0].mxu0
    %442 = vmatprep.mubr.f32.mxu0 0.0
    %443 = vmatmul.mubr.f32.gmra.mrb[0].mxu0 %v365
    %v444 = vpop.f32.mrb[0].mxu0
    %v445 = vadd.f32 0.0, %v444
    %v446 = vpop.f32.mrb[0].mxu0
    %447 = vmatprep.mubr.f32.mxu0 0.0
    %448 = vmatmul.mubr.f32.gmra.mrb[0].mxu0 %v368
    %v449 = vpop.f32.mrb[0].mxu0
    %v450 = vadd.f32 0.0, %v449
    %v451 = vpop.f32.mrb[0].mxu0
    %452 = vmatprep.mubr.f32.mxu0 0.0
    %453 = vmatmul.mubr.f32.gmra.mrb[0].mxu0 %v371
    %v454 = vpop.f32.mrb[0].mxu0
    %v455 = vadd.f32 0.0, %v454
    %v456 = vpop.f32.mrb[0].mxu0
    %457 = vdwg.mxu0
    %v458 = vadd.f32 %v325, %v440
    %v459 = vadd.f32 %v326, %v445
    %v460 = vadd.f32 %v327, %v450
    %v461 = vadd.f32 %v328, %v455
    %462 = vst.msk [vmem:[#allocation4] sm:$0xff] %vm223, %v458
    %463 = vst.msk [vmem:[#allocation4 + $0x8] sm:$0xff] %vm223, %v459
    %464 = vst.msk [vmem:[#allocation4 + $0x10] sm:$0xff] %vm223, %v460
    %465 = vst.msk [vmem:[#allocation4 + $0x18] sm:$0xff] %vm223, %v461
    %v466 = vld [vmem:[#allocation5] sm:$0x1]
    %v467 = vsel %vm223, %v81, 0.0
    %v468 = vsel %vm223, %v82, 0.0
    %v469 = vadd.f32 %v467, %v468
    %v470 = vrot.slane %v469, 4
    %v471 = vadd.f32 %v469, %v470
    %v472 = vrot.slane %v471, 2
    %v473 = vadd.f32 %v471, %v472
    %v474 = vrot.slane %v473, 1
    %v475 = vadd.f32 %v473, %v474
    %v476 = vadd.f32 %v466, %v475
    %vm477 = vcmask 253952
    %478 = vst.msk [vmem:[#allocation5] sm:$0x1] %vm477, %v476
    %v479 = vld [vmem:[#allocation6] sm:$0x1]
    %v480 = vsel %vm223, %v83, 0.0
    %v481 = vsel %vm223, %v84, 0.0
    %v482 = vadd.f32 %v480, %v481
    %v483 = vrot.slane %v482, 4
    %v484 = vadd.f32 %v482, %v483
    %v485 = vrot.slane %v484, 2
    %v486 = vadd.f32 %v484, %v485
    %v487 = vrot.slane %v486, 1
    %v488 = vadd.f32 %v486, %v487
    %v489 = vadd.f32 %v479, %v488
    %490 = vst.msk [vmem:[#allocation6] sm:$0x1] %vm477, %v489
    // Predicated region
    $region22: #{tpu_custom_call.1} parent=1 // pred_check
      %p491 = pneg %p42
    $region23: #{tpu_custom_call.1} parent=1 // pred_check_branch
      %493 = sbr.rel (%p491) target = $region25
    $region24: #{tpu_custom_call.1} parent=1 // pred_region
      %s494 = scvt.s32.f32 %s62
      %v495 = vstv %s494
      %v496 = vrcp.pop %v495
      %s497 = vtos %v496
      %v498 = vld [vmem:[#allocation5] sm:$0x1]
      %v499 = vld [vmem:[#allocation6] sm:$0x1]
      %v500 = vld [vmem:[#allocation2] sm:$0xff]
      %v501 = vld [vmem:[#allocation2 + $0x8] sm:$0xff]
      %v502 = vld [vmem:[#allocation2 + $0x10] sm:$0xff]
      %v503 = vld [vmem:[#allocation2 + $0x18] sm:$0xff]
      %504 = vxpose.xlu0.b32.start [1/16] %v498, 128
      %505 = vxpose.xlu0.b32.cont [2/16] 0.0, 128
      %506 = vxpose.xlu0.b32.cont [3/16] 0.0, 128
      %507 = vxpose.xlu0.b32.cont [4/16] 0.0, 128
      %508 = vxpose.xlu0.b32.cont [5/16] 0.0, 128
      %509 = vxpose.xlu0.b32.cont [6/16] 0.0, 128
      %510 = vxpose.xlu0.b32.cont [7/16] 0.0, 128
      %511 = vxpose.xlu0.b32.cont [8/16] 0.0, 128
      %512 = vxpose.xlu0.b32.cont [9/16] 0.0, 128
      %513 = vxpose.xlu0.b32.cont [10/16] 0.0, 128
      %514 = vxpose.xlu0.b32.cont [11/16] 0.0, 128
      %515 = vxpose.xlu0.b32.cont [12/16] 0.0, 128
      %516 = vxpose.xlu0.b32.cont [13/16] 0.0, 128
      %517 = vxpose.xlu0.b32.cont [14/16] 0.0, 128
      %518 = vxpose.xlu0.b32.cont [15/16] 0.0, 128
      %519 = vxpose.xlu0.b32.end [16/16] 0.0, 128
      %v520 = vpop.trf.xlu0
      %v521 = vpop.trf.xlu0
      %v522 = vpop.trf.xlu0
      %v523 = vpop.trf.xlu0
      %v524 = vpop.trf.xlu0
      %v525 = vpop.trf.xlu0
      %v526 = vpop.trf.xlu0
      %v527 = vpop.trf.xlu0
      %v528 = vpop.trf.xlu0
      %v529 = vpop.trf.xlu0
      %v530 = vpop.trf.xlu0
      %v531 = vpop.trf.xlu0
      %v532 = vpop.trf.xlu0
      %v533 = vpop.trf.xlu0
      %v534 = vpop.trf.xlu0
      %v535 = vpop.trf.xlu0
      %vm536 = vcmask 7168
      %v538 = vsel %vm536, %v520, 0
      %v541 = vsel %vm536, %v521, 0
      %v544 = vsel %vm536, %v522, 0
      %v547 = vsel %vm536, %v523, 0
      %vm549 = vcmask 1040384
      %v551 = vsel %vm549, %v499, 0
      %553 = vmatprep.subr.mxu0 0.0
      %554 = vmatpush1.msra.mxu0 %v551
      %555 = vmatprep.subr.mxu0 0.0
      %556 = vmatpush1.msra.mxu0 0.0
      %557 = vmatprep.subr.mxu0 0.0
      %558 = vmatpush1.msra.mxu0 0.0
      %559 = vmatprep.subr.mxu0 0.0
      %560 = vmatpush1.msra.mxu0 0.0
      %561 = vmatprep.subr.mxu0 0.0
      %562 = vmatpush1.msra.mxu0 0.0
      %563 = vmatprep.subr.mxu0 0.0
      %564 = vmatpush1.msra.mxu0 0.0
      %565 = vmatprep.subr.mxu0 0.0
      %566 = vmatpush1.msra.mxu0 0.0
      %567 = vmatprep.subr.mxu0 0.0
      %568 = vmatpush1.msra.mxu0 0.0
      %569 = vmatprep.subr.mxu0 0.0
      %570 = vmatpush1.msra.mxu0 0.0
      %571 = vmatprep.subr.mxu0 0.0
      %572 = vmatpush1.msra.mxu0 0.0
      %573 = vmatprep.subr.mxu0 0.0
      %574 = vmatpush1.msra.mxu0 0.0
      %575 = vmatprep.subr.mxu0 0.0
      %576 = vmatpush1.msra.mxu0 0.0
      %577 = vmatprep.subr.mxu0 0.0
      %578 = vmatpush1.msra.mxu0 0.0
      %579 = vmatprep.subr.mxu0 0.0
      %580 = vmatpush1.msra.mxu0 0.0
      %581 = vmatprep.subr.mxu0 0.0
      %582 = vmatpush1.msra.mxu0 0.0
      %583 = vmatprep.subr.mxu0 0.0
      %584 = vmatpush1.msra.mxu0 0.0
      %585 = vmatprep.subr.mxu0 0.0
      %586 = vmatpush1.msra.mxu0 0.0
      %587 = vmatprep.subr.mxu0 0.0
      %588 = vmatpush1.msra.mxu0 0.0
      %589 = vmatprep.subr.mxu0 0.0
      %590 = vmatpush1.msra.mxu0 0.0
      %591 = vmatprep.subr.mxu0 0.0
      %592 = vmatpush1.msra.mxu0 0.0
      %593 = vmatprep.subr.mxu0 0.0
      %594 = vmatpush1.msra.mxu0 0.0
      %595 = vmatprep.subr.mxu0 0.0
      %596 = vmatpush1.msra.mxu0 0.0
      %597 = vmatprep.subr.mxu0 0.0
      %598 = vmatpush1.msra.mxu0 0.0
      %599 = vmatprep.subr.mxu0 0.0
      %600 = vmatpush1.msra.mxu0 0.0
      %601 = vmatprep.subr.mxu0 0.0
      %602 = vmatpush1.msra.mxu0 0.0
      %603 = vmatprep.subr.mxu0 0.0
      %604 = vmatpush1.msra.mxu0 0.0
      %605 = vmatprep.subr.mxu0 0.0
      %606 = vmatpush1.msra.mxu0 0.0
      %607 = vmatprep.subr.mxu0 0.0
      %608 = vmatpush1.msra.mxu0 0.0
      %609 = vmatprep.subr.mxu0 0.0
      %610 = vmatpush1.msra.mxu0 0.0
      %611 = vmatprep.subr.mxu0 0.0
      %612 = vmatpush1.msra.mxu0 0.0
      %613 = vmatprep.subr.mxu0 0.0
      %614 = vmatpush1.msra.mxu0 0.0
      %615 = vmatprep.subr.mxu0 0.0
      %616 = vmatpush1.msra.mxu0 0.0
      %617 = vmatprep.mubr.f32.mxu0 0.0
      %618 = vmatmul.mubr.f32.gmra.mrb[0].mxu0 %v538
      %v619 = vpop.f32.mrb[0].mxu0
      %v620 = vadd.f32 0.0, %v619
      %v621 = vpop.f32.mrb[0].mxu0
      %622 = vmatprep.mubr.f32.mxu0 0.0
      %623 = vmatmul.mubr.f32.gmra.mrb[0].mxu0 %v541
      %v624 = vpop.f32.mrb[0].mxu0
      %v625 = vadd.f32 0.0, %v624
      %v626 = vpop.f32.mrb[0].mxu0
      %627 = vmatprep.mubr.f32.mxu0 0.0
      %628 = vmatmul.mubr.f32.gmra.mrb[0].mxu0 %v544
      %v629 = vpop.f32.mrb[0].mxu0
      %v630 = vadd.f32 0.0, %v629
      %v631 = vpop.f32.mrb[0].mxu0
      %632 = vmatprep.mubr.f32.mxu0 0.0
      %633 = vmatmul.mubr.f32.gmra.mrb[0].mxu0 %v547
      %v634 = vpop.f32.mrb[0].mxu0
      %v635 = vadd.f32 0.0, %v634
      %v636 = vpop.f32.mrb[0].mxu0
      %637 = vdwg.mxu0
      %v638 = vstv %s497
      %v639 = vmul.f32 %v638, %v620
      %v640 = vmul.f32 %v638, %v625
      %v641 = vmul.f32 %v638, %v630
      %v642 = vmul.f32 %v638, %v635
      %v643 = vsub.f32 %v500, %v639
      %v644 = vsub.f32 %v501, %v640
      %v645 = vsub.f32 %v502, %v641
      %v646 = vsub.f32 %v503, %v642
      %v647 = vmul.f32 %v643, %v638
      %v648 = vmul.f32 %v644, %v638
      %v649 = vmul.f32 %v645, %v638
      %v650 = vmul.f32 %v646, %v638
      %v651 = vld [vmem:[#allocation3] sm:$0xff]
      %v652 = vld [vmem:[#allocation3 + $0x8] sm:$0xff]
      %v653 = vld [vmem:[#allocation3 + $0x10] sm:$0xff]
      %v654 = vld [vmem:[#allocation3 + $0x18] sm:$0xff]
      %v656 = vsel %vm549, %v498, 0
      %658 = vmatprep.subr.mxu0 0.0
      %659 = vmatpush1.msra.mxu0 %v656
      %660 = vmatprep.subr.mxu0 0.0
      %661 = vmatpush1.msra.mxu0 0.0
      %662 = vmatprep.subr.mxu0 0.0
      %663 = vmatpush1.msra.mxu0 0.0
      %664 = vmatprep.subr.mxu0 0.0
      %665 = vmatpush1.msra.mxu0 0.0
      %666 = vmatprep.subr.mxu0 0.0
      %667 = vmatpush1.msra.mxu0 0.0
      %668 = vmatprep.subr.mxu0 0.0
      %669 = vmatpush1.msra.mxu0 0.0
      %670 = vmatprep.subr.mxu0 0.0
      %671 = vmatpush1.msra.mxu0 0.0
      %672 = vmatprep.subr.mxu0 0.0
      %673 = vmatpush1.msra.mxu0 0.0
      %674 = vmatprep.subr.mxu0 0.0
      %675 = vmatpush1.msra.mxu0 0.0
      %676 = vmatprep.subr.mxu0 0.0
      %677 = vmatpush1.msra.mxu0 0.0
      %678 = vmatprep.subr.mxu0 0.0
      %679 = vmatpush1.msra.mxu0 0.0
      %680 = vmatprep.subr.mxu0 0.0
      %681 = vmatpush1.msra.mxu0 0.0
      %682 = vmatprep.subr.mxu0 0.0
      %683 = vmatpush1.msra.mxu0 0.0
      %684 = vmatprep.subr.mxu0 0.0
      %685 = vmatpush1.msra.mxu0 0.0
      %686 = vmatprep.subr.mxu0 0.0
      %687 = vmatpush1.msra.mxu0 0.0
      %688 = vmatprep.subr.mxu0 0.0
      %689 = vmatpush1.msra.mxu0 0.0
      %690 = vmatprep.subr.mxu0 0.0
      %691 = vmatpush1.msra.mxu0 0.0
      %692 = vmatprep.subr.mxu0 0.0
      %693 = vmatpush1.msra.mxu0 0.0
      %694 = vmatprep.subr.mxu0 0.0
      %695 = vmatpush1.msra.mxu0 0.0
      %696 = vmatprep.subr.mxu0 0.0
      %697 = vmatpush1.msra.mxu0 0.0
      %698 = vmatprep.subr.mxu0 0.0
      %699 = vmatpush1.msra.mxu0 0.0
      %700 = vmatprep.subr.mxu0 0.0
      %701 = vmatpush1.msra.mxu0 0.0
      %702 = vmatprep.subr.mxu0 0.0
      %703 = vmatpush1.msra.mxu0 0.0
      %704 = vmatprep.subr.mxu0 0.0
      %705 = vmatpush1.msra.mxu0 0.0
      %706 = vmatprep.subr.mxu0 0.0
      %707 = vmatpush1.msra.mxu0 0.0
      %708 = vmatprep.subr.mxu0 0.0
      %709 = vmatpush1.msra.mxu0 0.0
      %710 = vmatprep.subr.mxu0 0.0
      %711 = vmatpush1.msra.mxu0 0.0
      %712 = vmatprep.subr.mxu0 0.0
      %713 = vmatpush1.msra.mxu0 0.0
      %714 = vmatprep.subr.mxu0 0.0
      %715 = vmatpush1.msra.mxu0 0.0
      %716 = vmatprep.subr.mxu0 0.0
      %717 = vmatpush1.msra.mxu0 0.0
      %718 = vmatprep.subr.mxu0 0.0
      %719 = vmatpush1.msra.mxu0 0.0
      %720 = vmatprep.subr.mxu0 0.0
      %721 = vmatpush1.msra.mxu0 0.0
      %722 = vmatprep.mubr.f32.mxu0 0.0
      %723 = vmatmul.mubr.f32.gmra.mrb[0].mxu0 %v538
      %v724 = vpop.f32.mrb[0].mxu0
      %v725 = vadd.f32 0.0, %v724
      %v726 = vpop.f32.mrb[0].mxu0
      %727 = vmatprep.mubr.f32.mxu0 0.0
      %728 = vmatmul.mubr.f32.gmra.mrb[0].mxu0 %v541
      %v729 = vpop.f32.mrb[0].mxu0
      %v730 = vadd.f32 0.0, %v729
      %v731 = vpop.f32.mrb[0].mxu0
      %732 = vmatprep.mubr.f32.mxu0 0.0
      %733 = vmatmul.mubr.f32.gmra.mrb[0].mxu0 %v544
      %v734 = vpop.f32.mrb[0].mxu0
      %v735 = vadd.f32 0.0, %v734
      %v736 = vpop.f32.mrb[0].mxu0
      %737 = vmatprep.mubr.f32.mxu0 0.0
      %738 = vmatmul.mubr.f32.gmra.mrb[0].mxu0 %v547
      %v739 = vpop.f32.mrb[0].mxu0
      %v740 = vadd.f32 0.0, %v739
      %v741 = vpop.f32.mrb[0].mxu0
      %742 = vdwg.mxu0
      %v743 = vmul.f32 %v638, %v725
      %v744 = vmul.f32 %v638, %v730
      %v745 = vmul.f32 %v638, %v735
      %v746 = vmul.f32 %v638, %v740
      %v747 = vsub.f32 %v651, %v743
      %v748 = vsub.f32 %v652, %v744
      %v749 = vsub.f32 %v653, %v745
      %v750 = vsub.f32 %v654, %v746
      %v751 = vmul.f32 %v747, %v638
      %v752 = vmul.f32 %v748, %v638
      %v753 = vmul.f32 %v749, %v638
      %v754 = vmul.f32 %v750, %v638
      %v755 = vld [vmem:[#allocation4] sm:$0xff]
      %v756 = vld [vmem:[#allocation4 + $0x8] sm:$0xff]
      %v757 = vld [vmem:[#allocation4 + $0x10] sm:$0xff]
      %v758 = vld [vmem:[#allocation4 + $0x18] sm:$0xff]
      %759 = vxpose.xlu0.b32.start [1/16] %v499, 128
      %760 = vxpose.xlu0.b32.cont [2/16] 0.0, 128
      %761 = vxpose.xlu0.b32.cont [3/16] 0.0, 128
      %762 = vxpose.xlu0.b32.cont [4/16] 0.0, 128
      %763 = vxpose.xlu0.b32.cont [5/16] 0.0, 128
      %764 = vxpose.xlu0.b32.cont [6/16] 0.0, 128
      %765 = vxpose.xlu0.b32.cont [7/16] 0.0, 128
      %766 = vxpose.xlu0.b32.cont [8/16] 0.0, 128
      %767 = vxpose.xlu0.b32.cont [9/16] 0.0, 128
      %768 = vxpose.xlu0.b32.cont [10/16] 0.0, 128
      %769 = vxpose.xlu0.b32.cont [11/16] 0.0, 128
      %770 = vxpose.xlu0.b32.cont [12/16] 0.0, 128
      %771 = vxpose.xlu0.b32.cont [13/16] 0.0, 128
      %772 = vxpose.xlu0.b32.cont [14/16] 0.0, 128
      %773 = vxpose.xlu0.b32.cont [15/16] 0.0, 128
      %774 = vxpose.xlu0.b32.end [16/16] 0.0, 128
      %v775 = vpop.trf.xlu0
      %v776 = vpop.trf.xlu0
      %v777 = vpop.trf.xlu0
      %v778 = vpop.trf.xlu0
      %v779 = vpop.trf.xlu0
      %v780 = vpop.trf.xlu0
      %v781 = vpop.trf.xlu0
      %v782 = vpop.trf.xlu0
      %v783 = vpop.trf.xlu0
      %v784 = vpop.trf.xlu0
      %v785 = vpop.trf.xlu0
      %v786 = vpop.trf.xlu0
      %v787 = vpop.trf.xlu0
      %v788 = vpop.trf.xlu0
      %v789 = vpop.trf.xlu0
      %v790 = vpop.trf.xlu0
      %v792 = vsel %vm536, %v775, 0
      %v795 = vsel %vm536, %v776, 0
      %v798 = vsel %vm536, %v777, 0
      %v801 = vsel %vm536, %v778, 0
      %803 = vmatprep.subr.mxu0 0.0
      %804 = vmatpush1.msra.mxu0 %v551
      %805 = vmatprep.subr.mxu0 0.0
      %806 = vmatpush1.msra.mxu0 0.0
      %807 = vmatprep.subr.mxu0 0.0
      %808 = vmatpush1.msra.mxu0 0.0
      %809 = vmatprep.subr.mxu0 0.0
      %810 = vmatpush1.msra.mxu0 0.0
      %811 = vmatprep.subr.mxu0 0.0
      %812 = vmatpush1.msra.mxu0 0.0
      %813 = vmatprep.subr.mxu0 0.0
      %814 = vmatpush1.msra.mxu0 0.0
      %815 = vmatprep.subr.mxu0 0.0
      %816 = vmatpush1.msra.mxu0 0.0
      %817 = vmatprep.subr.mxu0 0.0
      %818 = vmatpush1.msra.mxu0 0.0
      %819 = vmatprep.subr.mxu0 0.0
      %820 = vmatpush1.msra.mxu0 0.0
      %821 = vmatprep.subr.mxu0 0.0
      %822 = vmatpush1.msra.mxu0 0.0
      %823 = vmatprep.subr.mxu0 0.0
      %824 = vmatpush1.msra.mxu0 0.0
      %825 = vmatprep.subr.mxu0 0.0
      %826 = vmatpush1.msra.mxu0 0.0
      %827 = vmatprep.subr.mxu0 0.0
      %828 = vmatpush1.msra.mxu0 0.0
      %829 = vmatprep.subr.mxu0 0.0
      %830 = vmatpush1.msra.mxu0 0.0
      %831 = vmatprep.subr.mxu0 0.0
      %832 = vmatpush1.msra.mxu0 0.0
      %833 = vmatprep.subr.mxu0 0.0
      %834 = vmatpush1.msra.mxu0 0.0
      %835 = vmatprep.subr.mxu0 0.0
      %836 = vmatpush1.msra.mxu0 0.0
      %837 = vmatprep.subr.mxu0 0.0
      %838 = vmatpush1.msra.mxu0 0.0
      %839 = vmatprep.subr.mxu0 0.0
      %840 = vmatpush1.msra.mxu0 0.0
      %841 = vmatprep.subr.mxu0 0.0
      %842 = vmatpush1.msra.mxu0 0.0
      %843 = vmatprep.subr.mxu0 0.0
      %844 = vmatpush1.msra.mxu0 0.0
      %845 = vmatprep.subr.mxu0 0.0
      %846 = vmatpush1.msra.mxu0 0.0
      %847 = vmatprep.subr.mxu0 0.0
      %848 = vmatpush1.msra.mxu0 0.0
      %849 = vmatprep.subr.mxu0 0.0
      %850 = vmatpush1.msra.mxu0 0.0
      %851 = vmatprep.subr.mxu0 0.0
      %852 = vmatpush1.msra.mxu0 0.0
      %853 = vmatprep.subr.mxu0 0.0
      %854 = vmatpush1.msra.mxu0 0.0
      %855 = vmatprep.subr.mxu0 0.0
      %856 = vmatpush1.msra.mxu0 0.0
      %857 = vmatprep.subr.mxu0 0.0
      %858 = vmatpush1.msra.mxu0 0.0
      %859 = vmatprep.subr.mxu0 0.0
      %860 = vmatpush1.msra.mxu0 0.0
      %861 = vmatprep.subr.mxu0 0.0
      %862 = vmatpush1.msra.mxu0 0.0
      %863 = vmatprep.subr.mxu0 0.0
      %864 = vmatpush1.msra.mxu0 0.0
      %865 = vmatprep.subr.mxu0 0.0
      %866 = vmatpush1.msra.mxu0 0.0
      %867 = vmatprep.mubr.f32.mxu0 0.0
      %868 = vmatmul.mubr.f32.gmra.mrb[0].mxu0 %v792
      %v869 = vpop.f32.mrb[0].mxu0
      %v870 = vadd.f32 0.0, %v869
      %v871 = vpop.f32.mrb[0].mxu0
      %872 = vmatprep.mubr.f32.mxu0 0.0
      %873 = vmatmul.mubr.f32.gmra.mrb[0].mxu0 %v795
      %v874 = vpop.f32.mrb[0].mxu0
      %v875 = vadd.f32 0.0, %v874
      %v876 = vpop.f32.mrb[0].mxu0
      %877 = vmatprep.mubr.f32.mxu0 0.0
      %878 = vmatmul.mubr.f32.gmra.mrb[0].mxu0 %v798
      %v879 = vpop.f32.mrb[0].mxu0
      %v880 = vadd.f32 0.0, %v879
      %v881 = vpop.f32.mrb[0].mxu0
      %882 = vmatprep.mubr.f32.mxu0 0.0
      %883 = vmatmul.mubr.f32.gmra.mrb[0].mxu0 %v801
      %v884 = vpop.f32.mrb[0].mxu0
      %v885 = vadd.f32 0.0, %v884
      %v886 = vpop.f32.mrb[0].mxu0
      %887 = vdwg.mxu0
      %v888 = vmul.f32 %v638, %v870
      %v889 = vmul.f32 %v638, %v875
      %v890 = vmul.f32 %v638, %v880
      %v891 = vmul.f32 %v638, %v885
      %v892 = vsub.f32 %v755, %v888
      %v893 = vsub.f32 %v756, %v889
      %v894 = vsub.f32 %v757, %v890
      %v895 = vsub.f32 %v758, %v891
      %v896 = vmul.f32 %v892, %v638
      %v897 = vmul.f32 %v893, %v638
      %v898 = vmul.f32 %v894, %v638
      %v899 = vmul.f32 %v895, %v638
      %v900 = vmul.f32 %v647, %v647
      %v901 = vmul.f32 %v648, %v648
      %v902 = vmul.f32 %v649, %v649
      %v903 = vmul.f32 %v650, %v650
      %v904 = vsel %vm223, %v900, 0.0
      %v905 = vsel %vm223, %v901, 0.0
      %v906 = vadd.f32 %v904, %v905
      %v907 = vsel %vm223, %v902, 0.0
      %v908 = vadd.f32 %v906, %v907
      %v909 = vsel %vm223, %v903, 0.0
      %v910 = vadd.f32 %v908, %v909
      %911 = vadd.xlane.f32.xlu0 %v910
      %v912 = vpop.xlane.xlu0 %911
      %v913 = vrot.slane %v912, 4
      %v914 = vadd.f32 %v912, %v913
      %v915 = vrot.slane %v914, 2
      %v916 = vadd.f32 %v914, %v915
      %v917 = vrot.slane %v916, 1
      %v918 = vadd.f32 %v916, %v917
      %s919 = vtos %v918
      %v920 = vstv %s919
      %v921 = vrsqrt.pop %v920
      %v922 = vmul.f32 %v920, %v921
      %vm923 = vcmp.eq.f32.partialorder %v920, inf
      %v924 = vsel %vm923, %v920, %v922
      %vm925 = vcmp.eq.f32.partialorder %v920, 0.0
      %v926 = vand.u32 %v920, 2147483648
      %v927 = vsel %vm925, %v926, %v924
      %s928 = vtos %v927
      %s929 = smul.f32 %s494, %s928
      %v930 = vmul.f32 %v751, %v751
      %v931 = vmul.f32 %v752, %v752
      %v932 = vmul.f32 %v753, %v753
      %v933 = vmul.f32 %v754, %v754
      %v934 = vsel %vm223, %v930, 0.0
      %v935 = vsel %vm223, %v931, 0.0
      %v936 = vadd.f32 %v934, %v935
      %v937 = vsel %vm223, %v932, 0.0
      %v938 = vadd.f32 %v936, %v937
      %v939 = vsel %vm223, %v933, 0.0
      %v940 = vadd.f32 %v938, %v939
      %941 = vadd.xlane.f32.xlu0 %v940
      %v942 = vpop.xlane.xlu0 %941
      %v943 = vrot.slane %v942, 4
      %v944 = vadd.f32 %v942, %v943
      %v945 = vrot.slane %v944, 2
      %v946 = vadd.f32 %v944, %v945
      %v947 = vrot.slane %v946, 1
      %v948 = vadd.f32 %v946, %v947
      %s949 = vtos %v948
      %v950 = vstv %s949
      %v951 = vrsqrt.pop %v950
      %v952 = vmul.f32 %v950, %v951
      %vm953 = vcmp.eq.f32.partialorder %v950, inf
      %v954 = vsel %vm953, %v950, %v952
      %vm955 = vcmp.eq.f32.partialorder %v950, 0.0
      %v956 = vand.u32 %v950, 2147483648
      %v957 = vsel %vm955, %v956, %v954
      %s958 = vtos %v957
      %s959 = smul.f32 %s494, %s958
      %s960 = sadd.f32 %s959, 1e-08
      %v961 = vmul.f32 %v896, %v896
      %v962 = vmul.f32 %v897, %v897
      %v963 = vmul.f32 %v898, %v898
      %v964 = vmul.f32 %v899, %v899
      %v965 = vsel %vm223, %v961, 0.0
      %v966 = vsel %vm223, %v962, 0.0
      %v967 = vadd.f32 %v965, %v966
      %v968 = vsel %vm223, %v963, 0.0
      %v969 = vadd.f32 %v967, %v968
      %v970 = vsel %vm223, %v964, 0.0
      %v971 = vadd.f32 %v969, %v970
      %972 = vadd.xlane.f32.xlu0 %v971
      %v973 = vpop.xlane.xlu0 %972
      %v974 = vrot.slane %v973, 4
      %v975 = vadd.f32 %v973, %v974
      %v976 = vrot.slane %v975, 2
      %v977 = vadd.f32 %v975, %v976
      %v978 = vrot.slane %v977, 1
      %v979 = vadd.f32 %v977, %v978
      %s980 = vtos %v979
      %v981 = vstv %s980
      %v982 = vrsqrt.pop %v981
      %v983 = vmul.f32 %v981, %v982
      %vm984 = vcmp.eq.f32.partialorder %v981, inf
      %v985 = vsel %vm984, %v981, %v983
      %vm986 = vcmp.eq.f32.partialorder %v981, 0.0
      %v987 = vand.u32 %v981, 2147483648
      %v988 = vsel %vm986, %v987, %v985
      %s989 = vtos %v988
      %s990 = smul.f32 %s494, %s989
      %s991 = sadd.f32 %s990, 1e-08
      %s992 = smul.f32 %s960, %s991
      %v993 = vstv %s992
      %v994 = vrsqrt.pop %v993
      %v995 = vmul.f32 %v993, %v994
      %vm996 = vcmp.eq.f32.partialorder %v993, inf
      %v997 = vsel %vm996, %v993, %v995
      %vm998 = vcmp.eq.f32.partialorder %v993, 0.0
      %v999 = vand.u32 %v993, 2147483648
      %v1000 = vsel %vm998, %v999, %v997
      %s1001 = vtos %v1000
      %v1002 = vstv %s1001
      %v1003 = vrcp.pop %v1002
      %s1004 = vtos %v1003
      %s1005 = smul.f32 %s929, %s1004
      %s1006 = ssub.f32 1.0, %s1005
      %s1007 = scalar_lea.smem [#allocation14], 0
      %1008 = sst [smem:[%s1007]] %s1006
    $region25: #{tpu_custom_call.1} parent=1 // pred_fallthru
      _
    // Predicated region
    $region26: #{tpu_custom_call.1} parent=1 // pred_check
      _
    $region27: #{tpu_custom_call.1} parent=1 // pred_check_branch
      %1010 = sbr.rel (0) target = $region29
    $region28: #{tpu_custom_call.1} parent=1 // pred_region
      %s1012 = ssub.s32 16, 16
      %1013 = vsyncadd [#allocation11], %s1012
      %1016 = dma.smem_to_hbm [#allocation14], 16, %s3, [#allocation11]
    $region29: #{tpu_custom_call.1} parent=1 // pred_fallthru
      _
    // Predicated region
    $region30: #{tpu_custom_call.1} parent=1 // pred_check
      _
    $region31: #{tpu_custom_call.1} parent=1 // pred_check_branch
      %1018 = sbr.rel (0) target = $region33
    $region32: #{tpu_custom_call.1} parent=1 // pred_region
      %1019 = dma.done [#allocation11], 16
    $region33: #{tpu_custom_call.1} parent=1 // pred_fallthru
      _
    %1020 = sfence
    %1021 = vsyncpa [#allocation10], 1
    %1022 = vsyncpa [#allocation13], 1
    %1023 = vsyncpa [#allocation11], 1

</llo_original>
